<compile_context>
chip_gen: v6e
topology: v6e:2x2x1
jax: 0.10.0
libtpu: 0.0.40
codegen_flags: <defaults>
</compile_context>

<pallas_src>
import jax
import jax.numpy as jnp
from jax.experimental import pallas as pl
from jax.experimental.pallas import tpu as pltpu


def _round_up(v, m):
    return ((v + m - 1) // m) * m


def _se_fused_kernel(x_ref, w1t_ref, w2t_ref, o_ref):
    # x_ref:   (TB, C, HWp)  TB batch elements; channels on sublanes, spatial on lanes.
    # w1t_ref: (C, HIDDEN)   fc1 weight transposed, with 1/(H*W) pre-folded in.
    # w2t_ref: (HIDDEN, C)   fc2 weight transposed.
    # o_ref:   (TB, C, HWp)
    x = x_ref[...]

    # Global average pool: lane (XLU) reduction.  The 1/(H*W) lives in w1t, so
    # zero padding on the spatial axis contributes nothing.
    s = jnp.sum(x, axis=-1)                                              # (TB, C)

    # Squeeze/excite MLP (tiny next to the x read/write traffic).
    h = jnp.dot(s, w1t_ref[...], preferred_element_type=jnp.float32)    # (TB, HIDDEN)
    h = jnp.maximum(h, 0.0)
    g = jnp.dot(h, w2t_ref[...], preferred_element_type=jnp.float32)    # (TB, C)
    g = jax.nn.sigmoid(g)                                                # EUP exp, negligible

    # Excite: broadcast the per-(batch, channel) gate over all lanes.
    o_ref[...] = (x * g[:, :, None]).astype(o_ref.dtype)


def se_layer_forward(x, w1, w2):
    """SELayer.forward.

    x:  (B, C, H, W) float32 (NCHW, matching the PyTorch module).
    w1: (C//r, C)   float32  = nn.Linear(C, C//r, bias=False).weight
    w2: (C, C//r)   float32  = nn.Linear(C//r, C, bias=False).weight
    Returns (B, C, H, W) = x * sigmoid(relu(avgpool(x) @ w1.T) @ w2.T)[..., None, None]
    """
    b, c, h, w = x.shape
    hw = h * w
    hidden = w1.shape[0]
    itemsize = 4  # float32

    # ---- Layout plumbing (wrapper side) -------------------------------------
    # NCHW -> (B, C, H*W) is a free contiguous reshape.  Zero-pad the spatial
    # axis to a multiple of 128 only when needed (lane-dense stores).
    x2 = x.reshape(b, c, hw)
    hw_pad = _round_up(hw, 128)
    if hw_pad != hw:
        x2 = jnp.pad(x2, ((0, 0), (0, 0), (0, hw_pad - hw)))

    w1t = (jnp.transpose(w1) * (1.0 / float(hw))).astype(jnp.float32)   # (C, HIDDEN)
    w2t = jnp.transpose(w2).astype(jnp.float32)                         # (HIDDEN, C)

    # ---- Per-generation block sizing ----------------------------------------
    try:
        vmem_cap = int(pltpu.get_tpu_info().vmem_capacity_bytes)
    except Exception:  # conservative fallback = v7x (64 MiB per TensorCore)
        vmem_cap = 64 * 1024 * 1024

    slab_bytes = c * hw_pad * itemsize                 # one image block in VMEM
    # 2 double-buffered input blocks + 2 output blocks + weights must fit in
    # ~75% of VMEM (compiler headroom).
    w_vmem = 2 * (_round_up(c, 8) * _round_up(hidden, 128)
                  + _round_up(hidden, 8) * _round_up(c, 128)) * itemsize
    block_budget = max(slab_bytes,
                       (int(vmem_cap * 0.75) - w_vmem - (2 << 20)) // 4)
    tb = max(1, min(b, block_budget // slab_bytes))

    # Keep grid length >= 2 so v7x's two TensorCores both get batch blocks,
    # unless that would shrink the per-step payload below ~1 MiB (tiny problems
    # are step-overhead bound anyway; v5e/v6e have a single TC).
    if b >= 2 and (b // 2) * slab_bytes >= (1 << 20):
        tb = min(tb, b // 2)

    # Avoid partial blocks on the leading batch axis: largest divisor of B <= tb.
    while b % tb:
        tb -= 1
    grid = (b // tb,)

    block_bytes = tb * slab_bytes
    vmem_limit = int(min(vmem_cap * 0.9,
                         max(32 << 20, 4 * block_bytes + w_vmem + (4 << 20))))

    cost = pl.CostEstimate(
        flops=int(2 * b * c * hw + 4 * b * c * hidden),
        transcendentals=int(b * c),
        bytes_accessed=int(2 * b * c * hw_pad * itemsize
                           + (w1t.size + w2t.size) * itemsize),
    )

    out = pl.pallas_call(
        _se_fused_kernel,
        out_shape=jax.ShapeDtypeStruct((b, c, hw_pad), jnp.float32),
        grid=grid,
        in_specs=[
            pl.BlockSpec((tb, c, hw_pad), lambda i: (i, 0, 0)),   # x batch block
            pl.BlockSpec((c, hidden), lambda i: (0, 0)),          # w1t (resident)
            pl.BlockSpec((hidden, c), lambda i: (0, 0)),          # w2t (resident)
        ],
        out_specs=pl.BlockSpec((tb, c, hw_pad), lambda i: (i, 0, 0)),
        compiler_params=pltpu.CompilerParams(
            dimension_semantics=("parallel",),   # batch blocks over TCs (v7x megacore)
            vmem_limit_bytes=vmem_limit,
        ),
        cost_estimate=cost,
    )(x2, w1t, w2t)

    if hw_pad != hw:
        out = out[:, :, :hw]
    return out.reshape(b, c, h, w)


if __name__ == "__main__":
    # Module config: SELayer(channel=32, reduction=16)  ->  hidden = 2
    B, C, H, W = 2, 32, 16, 16
    REDUCTION = 16
    HIDDEN = C // REDUCTION

    key = jax.random.PRNGKey(0)
    kx, k1, k2 = jax.random.split(key, 3)

    x = jax.random.normal(kx, (B, C, H, W), dtype=jnp.float32)
    # nn.Linear(C, C//r, bias=False).weight  -> (HIDDEN, C)
    w1 = (0.2 * jax.random.normal(k1, (HIDDEN, C))).astype(jnp.float32)
    # nn.Linear(C//r, C, bias=False).weight  -> (C, HIDDEN)
    w2 = (0.2 * jax.random.normal(k2, (C, HIDDEN))).astype(jnp.float32)

    out = jax.block_until_ready(se_layer_forward(x, w1, w2))
    assert out.shape == (B, C, H, W), out.shape

    # Plain-JAX reference check of the full forward pass.
    y = x.mean(axis=(2, 3))                          # (B, C)
    y = jnp.maximum(y @ w1.T, 0.0)                   # (B, HIDDEN)
    y = jax.nn.sigmoid(y @ w2.T)                     # (B, C)
    ref = x * y[:, :, None, None]
    assert jnp.allclose(out, ref, atol=1e-4, rtol=1e-4), \
        float(jnp.max(jnp.abs(out - ref)))

    print("KERNEL_OK")
</pallas_src>

<mosaic_0001>
module attributes {stable_mosaic.version = 11 : i64} {
  func.func @_se_fused_kernel(%arg0: i32, %arg1: memref<2x32x256xf32, #tpu.memory_space<vmem>>, %arg2: memref<32x2xf32, #tpu.memory_space<vmem>>, %arg3: memref<2x32xf32, #tpu.memory_space<vmem>>, %arg4: memref<2x32x256xf32, #tpu.memory_space<vmem>>) attributes {dimension_semantics = [#tpu.dimension_semantics<parallel>], iteration_bounds = array<i64: 1>, scalar_prefetch = 0 : i64, scratch_operands = 0 : i64, tpu.core_type = #tpu.core_type<tc>, window_params = [{transform_indices = @transform_0, window_bounds = array<i64: 2, 32, 256>}, {pipeline_mode = #tpu.pipeline_mode<synchronous>, transform_indices = @transform_1, window_bounds = array<i64: 32, 2>}, {pipeline_mode = #tpu.pipeline_mode<synchronous>, transform_indices = @transform_2, window_bounds = array<i64: 2, 32>}, {transform_indices = @transform_3, window_bounds = array<i64: 2, 32, 256>}]} {
    %c0 = arith.constant 0 : index
    %c0_0 = arith.constant 0 : index
    %c0_1 = arith.constant 0 : index
    %0 = vector.load %arg1[%c0, %c0_0, %c0_1] : memref<2x32x256xf32, #tpu.memory_space<vmem>>, vector<2x32x256xf32>
    %cst = arith.constant dense<0.000000e+00> : vector<2x32xf32>
    %1 = vector.multi_reduction <add>, %0, %cst [2] : vector<2x32x256xf32> to vector<2x32xf32>
    %c0_2 = arith.constant 0 : index
    %c0_3 = arith.constant 0 : index
    %2 = vector.load %arg2[%c0_2, %c0_3] : memref<32x2xf32, #tpu.memory_space<vmem>>, vector<32x2xf32>
    %cst_4 = arith.constant dense<0.000000e+00> : vector<2x2xf32>
    %3 = tpu.matmul %1, %2, %cst_4 {dimension_numbers = #tpu.dot_dimension_numbers<[1], [0], [0], [1], [0, 0, 1, 1], [], []>} : vector<2x32xf32>, vector<32x2xf32>, vector<2x2xf32> -> vector<2x2xf32>
    %cst_5 = arith.constant 0.000000e+00 : f32
    %4 = vector.broadcast %cst_5 : f32 to vector<2x2xf32>
    %5 = arith.maximumf %3, %4 : vector<2x2xf32>
    %c0_6 = arith.constant 0 : index
    %c0_7 = arith.constant 0 : index
    %6 = vector.load %arg3[%c0_6, %c0_7] : memref<2x32xf32, #tpu.memory_space<vmem>>, vector<2x32xf32>
    %cst_8 = arith.constant dense<0.000000e+00> : vector<2x32xf32>
    %7 = tpu.matmul %5, %6, %cst_8 {dimension_numbers = #tpu.dot_dimension_numbers<[1], [0], [0], [1], [0, 0, 1, 1], [], []>} : vector<2x2xf32>, vector<2x32xf32>, vector<2x32xf32> -> vector<2x32xf32>
    %8 = arith.negf %7 : vector<2x32xf32>
    %9 = math.exp %8 : vector<2x32xf32>
    %cst_9 = arith.constant 1.000000e+00 : f32
    %10 = vector.broadcast %cst_9 : f32 to vector<2x32xf32>
    %11 = arith.addf %10, %9 : vector<2x32xf32>
    %12 = arith.divf %10, %11 : vector<2x32xf32>
    %13 = vector.shape_cast %12 : vector<2x32xf32> to vector<2x32x1xf32>
    %14 = vector.broadcast %13 : vector<2x32x1xf32> to vector<2x32x256xf32>
    %15 = arith.mulf %0, %14 : vector<2x32x256xf32>
    %c0_10 = arith.constant 0 : index
    %c0_11 = arith.constant 0 : index
    %c0_12 = arith.constant 0 : index
    %16 = vector.load %arg4[%c0_10, %c0_11, %c0_12] : memref<2x32x256xf32, #tpu.memory_space<vmem>>, vector<2x32x256xf32>
    tpu.vector_store %arg4[%c0_10, %c0_11, %c0_12], %15 {strides = array<i32>} : memref<2x32x256xf32, #tpu.memory_space<vmem>>, vector<2x32x256xf32>,
    return
  }
  func.func @transform_0(%arg0: i32) -> (i32, i32, i32) {
    %c0_i32 = arith.constant 0 : i32
    %c0_i32_0 = arith.constant 0 : i32
    %c0_i32_1 = arith.constant 0 : i32
    return %arg0, %c0_i32, %c0_i32_0 : i32, i32, i32
  }
  func.func @transform_1(%arg0: i32) -> (i32, i32) {
    %c0_i32 = arith.constant 0 : i32
    %c0_i32_0 = arith.constant 0 : i32
    %c0_i32_1 = arith.constant 0 : i32
    return %c0_i32, %c0_i32_0 : i32, i32
  }
  func.func @transform_2(%arg0: i32) -> (i32, i32) {
    %c0_i32 = arith.constant 0 : i32
    %c0_i32_0 = arith.constant 0 : i32
    %c0_i32_1 = arith.constant 0 : i32
    return %c0_i32, %c0_i32_0 : i32, i32
  }
  func.func @transform_3(%arg0: i32) -> (i32, i32, i32) {
    %c0_i32 = arith.constant 0 : i32
    %c0_i32_0 = arith.constant 0 : i32
    %c0_i32_1 = arith.constant 0 : i32
    return %arg0, %c0_i32, %c0_i32_0 : i32, i32, i32
  }
}

</mosaic_0001>

<llo_original>
// kernel: tpu_custom_call.1
$region0: #{tpu_custom_call.1}
  #allocation0 [shape = 'u32[]', space=smem, size = 0x4, offset = 0x4, fixed_abs, tag = 'smem constant byte address 0x4 - core index']
  #allocation1 [shape = 'u32[144,128]{1,0:T(1,128)}', space=vmem, size = 0x12000, scoped, tag = 'internal scratch']
  %s0 = inlined_call_operand.hbm [shape: f32[2,32,256], index: 0, kind: input, shape index: {}]
  %s1 = inlined_call_operand.vmem [shape: f32[32,2], index: 1, kind: input, shape index: {}]
  %s2 = inlined_call_operand.vmem [shape: f32[2,32], index: 2, kind: input, shape index: {}]
  %s3 = inlined_call_operand.hbm [shape: f32[2,32,256], index: 3, kind: output, shape index: {}]
  %s4 = sld [smem:[#allocation0]]
  $region26: #{tpu_custom_call.1} parent=0
    _
  %s6 = ssub.s32 1, %s4
  %s7 = scalar_select 0, %s6, %s4
  $region1: #{tpu_custom_call.1} parent=0
    #allocation2 [shape = 'u8[65536]{0}', space=vmem, size = 0x10000, scoped, tag = 'input window, operand 0, single buffered']
    #allocation3 [shape = 's32[1]{0}', space=sflag, size = 0x4, scoped, tag = 'scoped memory for tpu_custom_call.1']
    #allocation4 [shape = 's32[1]{0}', space=sflag, size = 0x4, scoped, tag = 'scoped memory for tpu_custom_call.1']
    #allocation5 [shape = 'u8[65536]{0}', space=vmem, size = 0x10000, scoped, tag = 'output window, operand 0, single buffered']
    %8 = vsyncpa [#allocation3], 0
    %9 = vsyncpa [#allocation4], 0
    // Predicated region
    $region2: #{tpu_custom_call.1} parent=1 // pred_check
      _
    $region3: #{tpu_custom_call.1} parent=1 // pred_check_branch
      %11 = sbr.rel (0) target = $region5
    $region4: #{tpu_custom_call.1} parent=1 // pred_region
      %s13 = ssub.s32 2048, 2048
      %14 = vsyncadd [#allocation3], %s13
      %s15 = sshll.u32 [#allocation2], 4
      %s16 = int_to_ptr.vmem [resolvable:$true] %s15
      %21 = dma.hbm_to_vmem [thread:$0]  %s0, 2048, %s16, [#allocation3], 256, 256, 16
    $region5: #{tpu_custom_call.1} parent=1 // pred_fallthru
      _
    // Predicated region
    $region6: #{tpu_custom_call.1} parent=1 // pred_check
      _
    $region7: #{tpu_custom_call.1} parent=1 // pred_check_branch
      %23 = sbr.rel (0) target = $region9
    $region8: #{tpu_custom_call.1} parent=1 // pred_region
      _
    $region9: #{tpu_custom_call.1} parent=1 // pred_fallthru
      _
    // Predicated region
    $region10: #{tpu_custom_call.1} parent=1 // pred_check
      _
    $region11: #{tpu_custom_call.1} parent=1 // pred_check_branch
      %25 = sbr.rel (0) target = $region13
    $region12: #{tpu_custom_call.1} parent=1 // pred_region
      _
    $region13: #{tpu_custom_call.1} parent=1 // pred_fallthru
      _
    // Predicated region
    $region14: #{tpu_custom_call.1} parent=1 // pred_check
      _
    $region15: #{tpu_custom_call.1} parent=1 // pred_check_branch
      %27 = sbr.rel (0) target = $region17
    $region16: #{tpu_custom_call.1} parent=1 // pred_region
      %28 = dma.done [#allocation3], 2048
    $region17: #{tpu_custom_call.1} parent=1 // pred_fallthru
      _
    %v29 = vld [vmem:[#allocation2] sm:$0xff]
    %v30 = vld [vmem:[#allocation2 + $0x8] sm:$0xff]
    %v31 = vld [vmem:[#allocation2 + $0x10] sm:$0xff]
    %v32 = vld [vmem:[#allocation2 + $0x18] sm:$0xff]
    %v33 = vld [vmem:[#allocation2 + $0x20] sm:$0xff]
    %v34 = vld [vmem:[#allocation2 + $0x28] sm:$0xff]
    %v35 = vld [vmem:[#allocation2 + $0x30] sm:$0xff]
    %v36 = vld [vmem:[#allocation2 + $0x38] sm:$0xff]
    %v37 = vld [vmem:[#allocation2 + $0x40] sm:$0xff]
    %v38 = vld [vmem:[#allocation2 + $0x48] sm:$0xff]
    %v39 = vld [vmem:[#allocation2 + $0x50] sm:$0xff]
    %v40 = vld [vmem:[#allocation2 + $0x58] sm:$0xff]
    %v41 = vld [vmem:[#allocation2 + $0x60] sm:$0xff]
    %v42 = vld [vmem:[#allocation2 + $0x68] sm:$0xff]
    %v43 = vld [vmem:[#allocation2 + $0x70] sm:$0xff]
    %v44 = vld [vmem:[#allocation2 + $0x78] sm:$0xff]
    %v45 = vadd.f32 %v29, %v30
    %46 = vadd.xlane.f32.xlu0 %v45
    %v47 = vpop.xlane.xlu0 %46
    %v48 = vadd.f32 %v31, %v32
    %49 = vadd.xlane.f32.xlu0 %v48
    %v50 = vpop.xlane.xlu0 %49
    %v51 = vadd.f32 %v33, %v34
    %52 = vadd.xlane.f32.xlu0 %v51
    %v53 = vpop.xlane.xlu0 %52
    %v54 = vadd.f32 %v35, %v36
    %55 = vadd.xlane.f32.xlu0 %v54
    %v56 = vpop.xlane.xlu0 %55
    %v57 = vadd.f32 %v37, %v38
    %58 = vadd.xlane.f32.xlu0 %v57
    %v59 = vpop.xlane.xlu0 %58
    %v60 = vadd.f32 %v39, %v40
    %61 = vadd.xlane.f32.xlu0 %v60
    %v62 = vpop.xlane.xlu0 %61
    %v63 = vadd.f32 %v41, %v42
    %64 = vadd.xlane.f32.xlu0 %v63
    %v65 = vpop.xlane.xlu0 %64
    %v66 = vadd.f32 %v43, %v44
    %67 = vadd.xlane.f32.xlu0 %v66
    %v68 = vpop.xlane.xlu0 %67
    %v69 = vld [vmem:[%s1] sm:$0xff]
    %v70 = vld [vmem:[%s1 + $0x8] sm:$0xff]
    %v71 = vld [vmem:[%s1 + $0x10] sm:$0xff]
    %v72 = vld [vmem:[%s1 + $0x18] sm:$0xff]
    %v81 = vlaneseq
    %v82 = vand.u32 %v81, 127
    %v83 = vlaneseq
    %v84 = vshrl.u32 %v83, 7
    %v85 = vsub.s32 %v82, %v84
    %v86 = vrot.slane %v47, %v85
    %v87 = vadd.s32 %v82, 4294967288
    %v88 = vlaneseq
    %v89 = vshrl.u32 %v88, 7
    %v90 = vsub.s32 %v87, %v89
    %v91 = vrot.slane %v50, %v90
    %vm92 = vcmask 130112
    %v93 = vsel %vm92, %v91, %v86
    %v94 = vadd.s32 %v82, 4294967280
    %v95 = vlaneseq
    %v96 = vshrl.u32 %v95, 7
    %v97 = vsub.s32 %v94, %v96
    %v98 = vrot.slane %v53, %v97
    %vm99 = vcmask 195712
    %v100 = vsel %vm99, %v98, %v93
    %v101 = vadd.s32 %v82, 4294967272
    %v102 = vlaneseq
    %v103 = vshrl.u32 %v102, 7
    %v104 = vsub.s32 %v101, %v103
    %v105 = vrot.slane %v56, %v104
    %vm106 = vcmask 261312
    %v107 = vsel %vm106, %v105, %v100
    %v108 = vlaneseq
    %v109 = vshrl.u32 %v108, 7
    %v110 = vsub.s32 %v82, %v109
    %v111 = vrot.slane %v59, %v110
    %v112 = vlaneseq
    %v113 = vshrl.u32 %v112, 7
    %v114 = vsub.s32 %v87, %v113
    %v115 = vrot.slane %v62, %v114
    %v116 = vsel %vm92, %v115, %v111
    %v117 = vlaneseq
    %v118 = vshrl.u32 %v117, 7
    %v119 = vsub.s32 %v94, %v118
    %v120 = vrot.slane %v65, %v119
    %v121 = vsel %vm99, %v120, %v116
    %v122 = vlaneseq
    %v123 = vshrl.u32 %v122, 7
    %v124 = vsub.s32 %v101, %v123
    %v125 = vrot.slane %v68, %v124
    %v126 = vsel %vm106, %v125, %v121
    %vm127 = vcmask 1041409
    %v128 = vsel %vm127, %v126, %v107
    %vm129 = vcmask 261120
    %v130 = vsel %vm129, %v128, 0
    %132 = vmatprep.subr.mxu0 0.0
    %133 = vmatpush1.msra.mxu0 0.0
    %134 = vmatprep.subr.mxu0 0.0
    %135 = vmatpush1.msra.mxu0 0.0
    %136 = vmatprep.subr.mxu0 0.0
    %137 = vmatpush1.msra.mxu0 0.0
    %138 = vmatprep.subr.mxu0 0.0
    %139 = vmatpush1.msra.mxu0 0.0
    %140 = vmatprep.subr.mxu0 0.0
    %141 = vmatpush1.msra.mxu0 0.0
    %142 = vmatprep.subr.mxu0 0.0
    %143 = vmatpush1.msra.mxu0 0.0
    %144 = vmatprep.subr.mxu0 0.0
    %145 = vmatpush1.msra.mxu0 0.0
    %146 = vmatprep.subr.mxu0 0.0
    %147 = vmatpush1.msra.mxu0 0.0
    %148 = vmatprep.subr.mxu0 0.0
    %149 = vmatpush1.msra.mxu0 0.0
    %150 = vmatprep.subr.mxu0 0.0
    %151 = vmatpush1.msra.mxu0 0.0
    %152 = vmatprep.subr.mxu0 0.0
    %153 = vmatpush1.msra.mxu0 0.0
    %154 = vmatprep.subr.mxu0 0.0
    %155 = vmatpush1.msra.mxu0 0.0
    %156 = vmatprep.subr.mxu0 0.0
    %157 = vmatpush1.msra.mxu0 %v72
    %158 = vmatprep.subr.mxu0 0.0
    %159 = vmatpush1.msra.mxu0 %v71
    %160 = vmatprep.subr.mxu0 0.0
    %161 = vmatpush1.msra.mxu0 %v70
    %162 = vmatprep.subr.mxu0 0.0
    %163 = vmatpush1.msra.mxu0 %v69
    %164 = vmatprep.subr.mxu0 0.0
    %165 = vmatpush2.msra.mxu0 0.0
    %166 = vmatprep.subr.mxu0 0.0
    %167 = vmatpush2.msra.mxu0 0.0
    %168 = vmatprep.subr.mxu0 0.0
    %169 = vmatpush2.msra.mxu0 0.0
    %170 = vmatprep.subr.mxu0 0.0
    %171 = vmatpush2.msra.mxu0 0.0
    %172 = vmatprep.subr.mxu0 0.0
    %173 = vmatpush2.msra.mxu0 0.0
    %174 = vmatprep.subr.mxu0 0.0
    %175 = vmatpush2.msra.mxu0 0.0
    %176 = vmatprep.subr.mxu0 0.0
    %177 = vmatpush2.msra.mxu0 0.0
    %178 = vmatprep.subr.mxu0 0.0
    %179 = vmatpush2.msra.mxu0 0.0
    %180 = vmatprep.subr.mxu0 0.0
    %181 = vmatpush2.msra.mxu0 0.0
    %182 = vmatprep.subr.mxu0 0.0
    %183 = vmatpush2.msra.mxu0 0.0
    %184 = vmatprep.subr.mxu0 0.0
    %185 = vmatpush2.msra.mxu0 0.0
    %186 = vmatprep.subr.mxu0 0.0
    %187 = vmatpush2.msra.mxu0 0.0
    %188 = vmatprep.subr.mxu0 0.0
    %189 = vmatpush2.msra.mxu0 0.0
    %190 = vmatprep.subr.mxu0 0.0
    %191 = vmatpush2.msra.mxu0 0.0
    %192 = vmatprep.subr.mxu0 0.0
    %193 = vmatpush2.msra.mxu0 0.0
    %194 = vmatprep.subr.mxu0 0.0
    %195 = vmatpush2.msra.mxu0 0.0
    %196 = vmatprep.mubr.f32.mxu0 0.0
    %197 = vmatmul.mubr.f32.gmra.mxu0 %v130
    %v198 = vpop.f32.mrf.mxu0
    %v199 = vadd.f32 0.0, %v198
    %v200 = vpop.f32.mrf.mxu0
    %201 = vdwg.mxu0
    %v202 = vmax.f32 %v199, 0.0
    %v203 = vld [vmem:[%s2] sm:$0x3]
    %vm204 = vcmask 15360
    %v206 = vsel %vm204, %v202, 0
    %vm208 = vcmask 1041408
    %v210 = vsel %vm208, %v203, 0
    %212 = vmatprep.subr.mxu0 0.0
    %213 = vmatpush1.msra.mxu0 0.0
    %214 = vmatprep.subr.mxu0 0.0
    %215 = vmatpush1.msra.mxu0 0.0
    %216 = vmatprep.subr.mxu0 0.0
    %217 = vmatpush1.msra.mxu0 0.0
    %218 = vmatprep.subr.mxu0 0.0
    %219 = vmatpush1.msra.mxu0 0.0
    %220 = vmatprep.subr.mxu0 0.0
    %221 = vmatpush1.msra.mxu0 0.0
    %222 = vmatprep.subr.mxu0 0.0
    %223 = vmatpush1.msra.mxu0 0.0
    %224 = vmatprep.subr.mxu0 0.0
    %225 = vmatpush1.msra.mxu0 0.0
    %226 = vmatprep.subr.mxu0 0.0
    %227 = vmatpush1.msra.mxu0 0.0
    %228 = vmatprep.subr.mxu0 0.0
    %229 = vmatpush1.msra.mxu0 0.0
    %230 = vmatprep.subr.mxu0 0.0
    %231 = vmatpush1.msra.mxu0 0.0
    %232 = vmatprep.subr.mxu0 0.0
    %233 = vmatpush1.msra.mxu0 0.0
    %234 = vmatprep.subr.mxu0 0.0
    %235 = vmatpush1.msra.mxu0 0.0
    %236 = vmatprep.subr.mxu0 0.0
    %237 = vmatpush1.msra.mxu0 0.0
    %238 = vmatprep.subr.mxu0 0.0
    %239 = vmatpush1.msra.mxu0 0.0
    %240 = vmatprep.subr.mxu0 0.0
    %241 = vmatpush1.msra.mxu0 0.0
    %242 = vmatprep.subr.mxu0 0.0
    %243 = vmatpush1.msra.mxu0 %v210
    %244 = vmatprep.subr.mxu0 0.0
    %245 = vmatpush2.msra.mxu0 0.0
    %246 = vmatprep.subr.mxu0 0.0
    %247 = vmatpush2.msra.mxu0 0.0
    %248 = vmatprep.subr.mxu0 0.0
    %249 = vmatpush2.msra.mxu0 0.0
    %250 = vmatprep.subr.mxu0 0.0
    %251 = vmatpush2.msra.mxu0 0.0
    %252 = vmatprep.subr.mxu0 0.0
    %253 = vmatpush2.msra.mxu0 0.0
    %254 = vmatprep.subr.mxu0 0.0
    %255 = vmatpush2.msra.mxu0 0.0
    %256 = vmatprep.subr.mxu0 0.0
    %257 = vmatpush2.msra.mxu0 0.0
    %258 = vmatprep.subr.mxu0 0.0
    %259 = vmatpush2.msra.mxu0 0.0
    %260 = vmatprep.subr.mxu0 0.0
    %261 = vmatpush2.msra.mxu0 0.0
    %262 = vmatprep.subr.mxu0 0.0
    %263 = vmatpush2.msra.mxu0 0.0
    %264 = vmatprep.subr.mxu0 0.0
    %265 = vmatpush2.msra.mxu0 0.0
    %266 = vmatprep.subr.mxu0 0.0
    %267 = vmatpush2.msra.mxu0 0.0
    %268 = vmatprep.subr.mxu0 0.0
    %269 = vmatpush2.msra.mxu0 0.0
    %270 = vmatprep.subr.mxu0 0.0
    %271 = vmatpush2.msra.mxu0 0.0
    %272 = vmatprep.subr.mxu0 0.0
    %273 = vmatpush2.msra.mxu0 0.0
    %274 = vmatprep.subr.mxu0 0.0
    %275 = vmatpush2.msra.mxu0 0.0
    %276 = vmatprep.mubr.f32.mxu0 0.0
    %277 = vmatmul.mubr.f32.gmra.mxu0 %v206
    %v278 = vpop.f32.mrf.mxu0
    %v279 = vadd.f32 0.0, %v278
    %v280 = vpop.f32.mrf.mxu0
    %281 = vdwg.mxu0
    %v282 = vxor.u32 %v279, 2147483648
    %v283 = vmul.f32 %v282, 1.442695
    %v284 = vpow.pop %v283
    %v285 = vadd.f32 %v284, 1.0
    %v286 = vrcp.pop %v285
    %v287 = vmul.f32 1.0, %v286
    %v288 = vlaneseq
    %v289 = vshrl.u32 %v288, 7
    %v290 = vsub.s32 0, %v289
    %v291 = vrot.slane %v287, %v290
    %293 = vbcast.lane.b32.xlu0 %v291, 256
    %v294 = vpop.permute.xlu0 %293
    %s296 = sor.u32 256, 8
    %297 = vbcast.lane.b32.xlu0 %v291, %s296
    %v298 = vpop.permute.xlu0 %297
    %s300 = sor.u32 256, 16
    %301 = vbcast.lane.b32.xlu0 %v291, %s300
    %v302 = vpop.permute.xlu0 %301
    %s304 = sor.u32 256, 24
    %305 = vbcast.lane.b32.xlu0 %v291, %s304
    %v306 = vpop.permute.xlu0 %305
    %v307 = vlaneseq
    %v308 = vshrl.u32 %v307, 7
    %v309 = vsub.s32 1, %v308
    %v310 = vrot.slane %v287, %v309
    %312 = vbcast.lane.b32.xlu0 %v310, 256
    %v313 = vpop.permute.xlu0 %312
    %s315 = sor.u32 256, 8
    %316 = vbcast.lane.b32.xlu0 %v310, %s315
    %v317 = vpop.permute.xlu0 %316
    %s319 = sor.u32 256, 16
    %320 = vbcast.lane.b32.xlu0 %v310, %s319
    %v321 = vpop.permute.xlu0 %320
    %s323 = sor.u32 256, 24
    %324 = vbcast.lane.b32.xlu0 %v310, %s323
    %v325 = vpop.permute.xlu0 %324
    %v326 = vmul.f32 %v29, %v294
    %v327 = vmul.f32 %v30, %v294
    %v328 = vmul.f32 %v31, %v298
    %v329 = vmul.f32 %v32, %v298
    %v330 = vmul.f32 %v33, %v302
    %v331 = vmul.f32 %v34, %v302
    %v332 = vmul.f32 %v35, %v306
    %v333 = vmul.f32 %v36, %v306
    %v334 = vmul.f32 %v37, %v313
    %v335 = vmul.f32 %v38, %v313
    %v336 = vmul.f32 %v39, %v317
    %v337 = vmul.f32 %v40, %v317
    %v338 = vmul.f32 %v41, %v321
    %v339 = vmul.f32 %v42, %v321
    %v340 = vmul.f32 %v43, %v325
    %v341 = vmul.f32 %v44, %v325
    %342 = vst [vmem:[#allocation5] sm:$0xff] %v326
    %343 = vst [vmem:[#allocation5 + $0x8] sm:$0xff] %v327
    %344 = vst [vmem:[#allocation5 + $0x10] sm:$0xff] %v328
    %345 = vst [vmem:[#allocation5 + $0x18] sm:$0xff] %v329
    %346 = vst [vmem:[#allocation5 + $0x20] sm:$0xff] %v330
    %347 = vst [vmem:[#allocation5 + $0x28] sm:$0xff] %v331
    %348 = vst [vmem:[#allocation5 + $0x30] sm:$0xff] %v332
    %349 = vst [vmem:[#allocation5 + $0x38] sm:$0xff] %v333
    %350 = vst [vmem:[#allocation5 + $0x40] sm:$0xff] %v334
    %351 = vst [vmem:[#allocation5 + $0x48] sm:$0xff] %v335
    %352 = vst [vmem:[#allocation5 + $0x50] sm:$0xff] %v336
    %353 = vst [vmem:[#allocation5 + $0x58] sm:$0xff] %v337
    %354 = vst [vmem:[#allocation5 + $0x60] sm:$0xff] %v338
    %355 = vst [vmem:[#allocation5 + $0x68] sm:$0xff] %v339
    %356 = vst [vmem:[#allocation5 + $0x70] sm:$0xff] %v340
    %357 = vst [vmem:[#allocation5 + $0x78] sm:$0xff] %v341
    // Predicated region
    $region18: #{tpu_custom_call.1} parent=1 // pred_check
      _
    $region19: #{tpu_custom_call.1} parent=1 // pred_check_branch
      %359 = sbr.rel (0) target = $region21
    $region20: #{tpu_custom_call.1} parent=1 // pred_region
      %s361 = ssub.s32 2048, 2048
      %362 = vsyncadd [#allocation4], %s361
      %s363 = sshll.u32 [#allocation5], 4
      %s364 = int_to_ptr.vmem [resolvable:$true] %s363
      %369 = dma.vmem_to_hbm [thread:$0]  %s364, 2048, %s3, [#allocation4], 256, 256, 16
    $region21: #{tpu_custom_call.1} parent=1 // pred_fallthru
      _
    // Predicated region
    $region22: #{tpu_custom_call.1} parent=1 // pred_check
      _
    $region23: #{tpu_custom_call.1} parent=1 // pred_check_branch
      %371 = sbr.rel (0) target = $region25
    $region24: #{tpu_custom_call.1} parent=1 // pred_region
      %372 = dma.done [#allocation4], 2048
    $region25: #{tpu_custom_call.1} parent=1 // pred_fallthru
      _
    %373 = vsyncpa [#allocation3], 1
    %374 = vsyncpa [#allocation4], 1

</llo_original>
